<compile_context>
chip_gen: v5e
topology: v5e:2x2
jax: 0.10.0
libtpu: 0.0.40
codegen_flags: <defaults>
</compile_context>

<pallas_src>
import functools

import jax
import jax.numpy as jnp
from jax.experimental import pallas as pl
from jax.experimental.pallas import tpu as pltpu

LANES = 128


def _round_up(x, m):
    return ((x + m - 1) // m) * m


def rnn_seq_kernel(xs_ref, h0_ref, wx_ref, wh_ref, b_ref, out_ref, xz_ref,
                   *, hidden_size):
    """Fused multi-timestep RNN cell.

    xs_ref : (T, I)          inputs, one row per timestep
    h0_ref : (1, N_pad)      initial hidden state, lanes [0:H] valid
    wx_ref : (I, N_pad)      fused [W_ih.T | 0.5*W_io.T] x-rows, lane-padded
    wh_ref : (N_pad, N_pad)  fused h-rows, zero-padded (rows >= H are zero) so
                             the whole 128-lane state slab is a valid matmul LHS
    b_ref  : (1, N_pad)      fused [b_ih | 0.5*b_io], lane-padded
    out_ref: (T, N_pad)      per-step slab: lanes [0:H] = tanh hidden,
                             lanes [H:H+O] = sigmoid output
    xz_ref : VMEM scratch (T, N_pad) holding the hoisted input projection
    """
    H = hidden_size
    N_pad = wh_ref.shape[1]
    T = xs_ref.shape[0]

    wh = wh_ref[...]

    # Hoisted input projection: one batched MXU op for all timesteps, removing
    # one matmul + bias add from every step's serial dependence chain.
    xz_ref[...] = (jnp.dot(xs_ref[...], wx_ref[...],
                           preferred_element_type=jnp.float32)
                   + b_ref[...])                                   # (T, N_pad)

    # Per-lane activation select, hoisted out of the loop: lanes < H are the
    # tanh (hidden) head; lanes >= H are the sigmoid (output) head whose
    # pre-activation was pre-scaled by 0.5, so sigmoid(x) = 0.5*tanh(x/2)+0.5
    # needs only ONE transcendental per step (single-port EUP).
    lane = jax.lax.broadcasted_iota(jnp.int32, (1, N_pad), 1)
    is_hidden = lane < H

    def step(t, state):
        # `state` is a (1, N_pad) vreg-resident carry — no VMEM round trip.
        z = (xz_ref[pl.ds(t, 1), :]
             + jnp.dot(state, wh, preferred_element_type=jnp.float32))
        th = jnp.tanh(z)
        act = jnp.where(is_hidden, th, 0.5 * th + 0.5)
        # Lanes >= H of the carried slab (sigmoid head + 0.5 padding) are
        # harmless in the recurrence ONLY because rows >= H of wh are zero.
        # Do not trim that zero padding.
        out_ref[pl.ds(t, 1), :] = act                  # lane-dense (1,128) store
        return act

    # Capped unroll: full unroll scales vreg live ranges with T and spills.
    jax.lax.fori_loop(0, T, step, h0_ref[...], unroll=min(T, 8))


def fuse_params(w_ih_t, b_ih, w_io_t, b_io, input_size, hidden_size, output_size):
    """Fuse the two Linear heads and pad to a 128-lane feature slab.

    The sigmoid head's columns are pre-scaled by 0.5 so the kernel can use the
    identity sigmoid(x) = 0.5 * tanh(x / 2) + 0.5 with a single tanh pass.
    """
    I, H, O = input_size, hidden_size, output_size
    N = H + O
    N_pad = _round_up(N, LANES)

    w_full = jnp.concatenate([w_ih_t, 0.5 * w_io_t], axis=1)   # (I+H, N)
    b_full = jnp.concatenate([b_ih, 0.5 * b_io], axis=1)       # (1, N)

    w_x = w_full[:I, :]                                  # (I, N)  x contribution
    w_h = w_full[I:, :]                                  # (H, N)  h contribution

    w_x_pad = jnp.zeros((I, N_pad), jnp.float32).at[:, :N].set(w_x)
    w_h_pad = jnp.zeros((N_pad, N_pad), jnp.float32).at[:H, :N].set(w_h)
    b_pad = jnp.zeros((1, N_pad), jnp.float32).at[:, :N].set(b_full)
    return w_x_pad, w_h_pad, b_pad


def rnn_sequence_forward(xs, h0, w_x_pad, w_h_pad, b_pad, hidden_size, output_size):
    """Run the RNN cell over a whole sequence in a single pallas_call.

    xs: (T, I) float32, h0: (1, H) float32.
    Returns (outputs (T, O) sigmoid head, hiddens (T, H) tanh head).
    """
    T = xs.shape[0]
    H, O = hidden_size, output_size
    N_pad = w_x_pad.shape[1]

    h0_pad = jnp.zeros((1, N_pad), jnp.float32).at[:, :H].set(h0)

    vmem = pl.BlockSpec(memory_space=pltpu.VMEM)   # whole array, VMEM-resident
    # TODO(synk): for long T, tile the time axis with a grid ("arbitrary") and
    # carry the state slab in scratch to stay under the scoped VMEM limit.

    slab = pl.pallas_call(
        functools.partial(rnn_seq_kernel, hidden_size=H),
        out_shape=jax.ShapeDtypeStruct((T, N_pad), jnp.float32),
        in_specs=[vmem, vmem, vmem, vmem, vmem],
        out_specs=vmem,
        scratch_shapes=[pltpu.VMEM((T, N_pad), jnp.float32)],
    )(xs, h0_pad, w_x_pad, w_h_pad, b_pad)

    hiddens = slab[:, :H]          # tanh(hidden) per step
    outputs = slab[:, H:H + O]     # sigmoid(output) per step
    return outputs, hiddens


def rnn_cell_forward(x, hidden, w_x_pad, w_h_pad, b_pad, hidden_size, output_size):
    """Exact module semantics: one step, returns (output (1,O), hidden_new (1,H))."""
    xs = x.reshape(1, -1)          # mirrors input_vector.resize_(1, input_size)
    outputs, hiddens = rnn_sequence_forward(
        xs, hidden, w_x_pad, w_h_pad, b_pad, hidden_size, output_size)
    return outputs, hiddens


def init_params(key, input_size, hidden_size, output_size):
    """Deterministic init matching nn.Linear shapes (weights stored transposed)."""
    C = input_size + hidden_size
    k1, k2, k3, k4 = jax.random.split(key, 4)
    bound = 1.0 / jnp.sqrt(jnp.float32(C))
    w_ih_t = jax.random.uniform(k1, (C, hidden_size), jnp.float32, -bound, bound)
    b_ih = jax.random.uniform(k2, (1, hidden_size), jnp.float32, -bound, bound)
    w_io_t = jax.random.uniform(k3, (C, output_size), jnp.float32, -bound, bound)
    b_io = jax.random.uniform(k4, (1, output_size), jnp.float32, -bound, bound)
    return w_ih_t, b_ih, w_io_t, b_io


if __name__ == "__main__":
    input_size, hidden_size, output_size = 16, 32, 8
    seq_len = 8

    key = jax.random.PRNGKey(0)
    kx, kp = jax.random.split(key)

    xs = jax.random.normal(kx, (seq_len, input_size), jnp.float32)
    hidden0 = jnp.zeros((1, hidden_size), jnp.float32)   # init_hidden_layer()

    w_ih_t, b_ih, w_io_t, b_io = init_params(kp, input_size, hidden_size, output_size)
    w_x_pad, w_h_pad, b_pad = fuse_params(
        w_ih_t, b_ih, w_io_t, b_io, input_size, hidden_size, output_size)

    # Fused-sequence kernel: ONE pallas_call for all timesteps.
    outputs, hiddens = rnn_sequence_forward(
        xs, hidden0, w_x_pad, w_h_pad, b_pad, hidden_size, output_size)
    outputs = jax.block_until_ready(outputs)
    hiddens = jax.block_until_ready(hiddens)

    # Single-step wrapper (exact PyTorch forward: (output, hidden)).
    out1, hid1 = rnn_cell_forward(
        xs[0], hidden0, w_x_pad, w_h_pad, b_pad, hidden_size, output_size)
    out1 = jax.block_until_ready(out1)
    hid1 = jax.block_until_ready(hid1)

    # Pure-JAX reference, faithful to the PyTorch module (eval mode).
    # TODO(synk): nn.Dropout(p=0.1) is identity in eval mode; training-mode
    # stochastic masking (pltpu.prng_*) is not implemented here.
    h = hidden0
    ref_outs, ref_hids = [], []
    for t in range(seq_len):
        combined = jnp.concatenate([xs[t].reshape(1, -1), h], axis=-1)
        h = jnp.tanh(combined @ w_ih_t + b_ih)
        o = jax.nn.sigmoid(combined @ w_io_t + b_io)
        ref_outs.append(o)
        ref_hids.append(h)
    ref_outs = jnp.concatenate(ref_outs, axis=0)
    ref_hids = jnp.concatenate(ref_hids, axis=0)

    assert outputs.shape == (seq_len, output_size)
    assert hiddens.shape == (seq_len, hidden_size)
    assert out1.shape == (1, output_size) and hid1.shape == (1, hidden_size)
    assert jnp.allclose(outputs, ref_outs, atol=2e-3), "sequence output mismatch"
    assert jnp.allclose(hiddens, ref_hids, atol=2e-3), "sequence hidden mismatch"
    assert jnp.allclose(out1, ref_outs[:1], atol=2e-3), "single-step output mismatch"
    assert jnp.allclose(hid1, ref_hids[:1], atol=2e-3), "single-step hidden mismatch"

    print("KERNEL_OK")
</pallas_src>

<mosaic_0001>
module attributes {stable_mosaic.version = 11 : i64} {
  func.func @rnn_seq_kernel(%arg0: memref<8x16xf32, #tpu.memory_space<vmem>>, %arg1: memref<1x128xf32, #tpu.memory_space<vmem>>, %arg2: memref<16x128xf32, #tpu.memory_space<vmem>>, %arg3: memref<128x128xf32, #tpu.memory_space<vmem>>, %arg4: memref<1x128xf32, #tpu.memory_space<vmem>>, %arg5: memref<8x128xf32, #tpu.memory_space<vmem>>, %arg6: memref<8x128xf32, #tpu.memory_space<vmem>>) attributes {dimension_semantics = [], scalar_prefetch = 0 : i64, scratch_operands = 1 : i64, tpu.core_type = #tpu.core_type<tc>} {
    %c0 = arith.constant 0 : index
    %c0_0 = arith.constant 0 : index
    %0 = vector.load %arg3[%c0, %c0_0] : memref<128x128xf32, #tpu.memory_space<vmem>>, vector<128x128xf32>
    %c0_1 = arith.constant 0 : index
    %c0_2 = arith.constant 0 : index
    %1 = vector.load %arg0[%c0_1, %c0_2] : memref<8x16xf32, #tpu.memory_space<vmem>>, vector<8x16xf32>
    %c0_3 = arith.constant 0 : index
    %c0_4 = arith.constant 0 : index
    %2 = vector.load %arg2[%c0_3, %c0_4] : memref<16x128xf32, #tpu.memory_space<vmem>>, vector<16x128xf32>
    %cst = arith.constant dense<0.000000e+00> : vector<8x128xf32>
    %3 = tpu.matmul %1, %2, %cst {dimension_numbers = #tpu.dot_dimension_numbers<[1], [0], [0], [1], [0, 0, 1, 1], [], []>} : vector<8x16xf32>, vector<16x128xf32>, vector<8x128xf32> -> vector<8x128xf32>
    %c0_5 = arith.constant 0 : index
    %c0_6 = arith.constant 0 : index
    %4 = vector.load %arg4[%c0_5, %c0_6] : memref<1x128xf32, #tpu.memory_space<vmem>>, vector<1x128xf32>
    %5 = vector.broadcast %4 : vector<1x128xf32> to vector<8x128xf32>
    %6 = arith.addf %3, %5 : vector<8x128xf32>
    %c0_7 = arith.constant 0 : index
    %c0_8 = arith.constant 0 : index
    %7 = vector.load %arg6[%c0_7, %c0_8] : memref<8x128xf32, #tpu.memory_space<vmem>>, vector<8x128xf32>
    tpu.vector_store %arg6[%c0_7, %c0_8], %6 {strides = array<i32>} : memref<8x128xf32, #tpu.memory_space<vmem>>, vector<8x128xf32>,
    %8 = tpu.iota {dimensions = array<i32: 1>} : vector<1x128xi32>
    %c32_i32 = arith.constant 32 : i32
    %9 = vector.broadcast %c32_i32 : i32 to vector<1x128xi32>
    %10 = arith.cmpi slt, %8, %9 : vector<1x128xi32>
    %c0_9 = arith.constant 0 : index
    %c0_10 = arith.constant 0 : index
    %11 = vector.load %arg1[%c0_9, %c0_10] : memref<1x128xf32, #tpu.memory_space<vmem>>, vector<1x128xf32>
    %c0_i32 = arith.constant 0 : i32
    %12 = arith.index_cast %c0_i32 : i32 to index
    %c0_11 = arith.constant 0 : index
    %13 = vector.load %arg6[%12, %c0_11] : memref<8x128xf32, #tpu.memory_space<vmem>>, vector<1x128xf32>
    %cst_12 = arith.constant dense<0.000000e+00> : vector<1x128xf32>
    %14 = tpu.matmul %11, %0, %cst_12 {dimension_numbers = #tpu.dot_dimension_numbers<[1], [0], [0], [1], [0, 0, 1, 1], [], []>} : vector<1x128xf32>, vector<128x128xf32>, vector<1x128xf32> -> vector<1x128xf32>
    %15 = arith.addf %13, %14 : vector<1x128xf32>
    %16 = math.tanh %15 : vector<1x128xf32>
    %cst_13 = arith.constant 5.000000e-01 : f32
    %17 = vector.broadcast %cst_13 : f32 to vector<1x128xf32>
    %18 = arith.mulf %17, %16 : vector<1x128xf32>
    %cst_14 = arith.constant 5.000000e-01 : f32
    %19 = vector.broadcast %cst_14 : f32 to vector<1x128xf32>
    %20 = arith.addf %18, %19 : vector<1x128xf32>
    %21 = arith.select %10, %16, %20 : vector<1x128xi1>, vector<1x128xf32>
    %22 = arith.index_cast %c0_i32 : i32 to index
    %c0_15 = arith.constant 0 : index
    %23 = vector.load %arg5[%22, %c0_15] : memref<8x128xf32, #tpu.memory_space<vmem>>, vector<1x128xf32>
    tpu.vector_store %arg5[%22, %c0_15], %21 {strides = array<i32>} : memref<8x128xf32, #tpu.memory_space<vmem>>, vector<1x128xf32>,
    %c1_i32 = arith.constant 1 : i32
    %24 = arith.index_cast %c1_i32 : i32 to index
    %c0_16 = arith.constant 0 : index
    %25 = vector.load %arg6[%24, %c0_16] : memref<8x128xf32, #tpu.memory_space<vmem>>, vector<1x128xf32>
    %cst_17 = arith.constant dense<0.000000e+00> : vector<1x128xf32>
    %26 = tpu.matmul %21, %0, %cst_17 {dimension_numbers = #tpu.dot_dimension_numbers<[1], [0], [0], [1], [0, 0, 1, 1], [], []>} : vector<1x128xf32>, vector<128x128xf32>, vector<1x128xf32> -> vector<1x128xf32>
    %27 = arith.addf %25, %26 : vector<1x128xf32>
    %28 = math.tanh %27 : vector<1x128xf32>
    %cst_18 = arith.constant 5.000000e-01 : f32
    %29 = vector.broadcast %cst_18 : f32 to vector<1x128xf32>
    %30 = arith.mulf %29, %28 : vector<1x128xf32>
    %cst_19 = arith.constant 5.000000e-01 : f32
    %31 = vector.broadcast %cst_19 : f32 to vector<1x128xf32>
    %32 = arith.addf %30, %31 : vector<1x128xf32>
    %33 = arith.select %10, %28, %32 : vector<1x128xi1>, vector<1x128xf32>
    %34 = arith.index_cast %c1_i32 : i32 to index
    %c0_20 = arith.constant 0 : index
    %35 = vector.load %arg5[%34, %c0_20] : memref<8x128xf32, #tpu.memory_space<vmem>>, vector<1x128xf32>
    tpu.vector_store %arg5[%34, %c0_20], %33 {strides = array<i32>} : memref<8x128xf32, #tpu.memory_space<vmem>>, vector<1x128xf32>,
    %c2_i32 = arith.constant 2 : i32
    %36 = arith.index_cast %c2_i32 : i32 to index
    %c0_21 = arith.constant 0 : index
    %37 = vector.load %arg6[%36, %c0_21] : memref<8x128xf32, #tpu.memory_space<vmem>>, vector<1x128xf32>
    %cst_22 = arith.constant dense<0.000000e+00> : vector<1x128xf32>
    %38 = tpu.matmul %33, %0, %cst_22 {dimension_numbers = #tpu.dot_dimension_numbers<[1], [0], [0], [1], [0, 0, 1, 1], [], []>} : vector<1x128xf32>, vector<128x128xf32>, vector<1x128xf32> -> vector<1x128xf32>
    %39 = arith.addf %37, %38 : vector<1x128xf32>
    %40 = math.tanh %39 : vector<1x128xf32>
    %cst_23 = arith.constant 5.000000e-01 : f32
    %41 = vector.broadcast %cst_23 : f32 to vector<1x128xf32>
    %42 = arith.mulf %41, %40 : vector<1x128xf32>
    %cst_24 = arith.constant 5.000000e-01 : f32
    %43 = vector.broadcast %cst_24 : f32 to vector<1x128xf32>
    %44 = arith.addf %42, %43 : vector<1x128xf32>
    %45 = arith.select %10, %40, %44 : vector<1x128xi1>, vector<1x128xf32>
    %46 = arith.index_cast %c2_i32 : i32 to index
    %c0_25 = arith.constant 0 : index
    %47 = vector.load %arg5[%46, %c0_25] : memref<8x128xf32, #tpu.memory_space<vmem>>, vector<1x128xf32>
    tpu.vector_store %arg5[%46, %c0_25], %45 {strides = array<i32>} : memref<8x128xf32, #tpu.memory_space<vmem>>, vector<1x128xf32>,
    %c3_i32 = arith.constant 3 : i32
    %48 = arith.index_cast %c3_i32 : i32 to index
    %c0_26 = arith.constant 0 : index
    %49 = vector.load %arg6[%48, %c0_26] : memref<8x128xf32, #tpu.memory_space<vmem>>, vector<1x128xf32>
    %cst_27 = arith.constant dense<0.000000e+00> : vector<1x128xf32>
    %50 = tpu.matmul %45, %0, %cst_27 {dimension_numbers = #tpu.dot_dimension_numbers<[1], [0], [0], [1], [0, 0, 1, 1], [], []>} : vector<1x128xf32>, vector<128x128xf32>, vector<1x128xf32> -> vector<1x128xf32>
    %51 = arith.addf %49, %50 : vector<1x128xf32>
    %52 = math.tanh %51 : vector<1x128xf32>
    %cst_28 = arith.constant 5.000000e-01 : f32
    %53 = vector.broadcast %cst_28 : f32 to vector<1x128xf32>
    %54 = arith.mulf %53, %52 : vector<1x128xf32>
    %cst_29 = arith.constant 5.000000e-01 : f32
    %55 = vector.broadcast %cst_29 : f32 to vector<1x128xf32>
    %56 = arith.addf %54, %55 : vector<1x128xf32>
    %57 = arith.select %10, %52, %56 : vector<1x128xi1>, vector<1x128xf32>
    %58 = arith.index_cast %c3_i32 : i32 to index
    %c0_30 = arith.constant 0 : index
    %59 = vector.load %arg5[%58, %c0_30] : memref<8x128xf32, #tpu.memory_space<vmem>>, vector<1x128xf32>
    tpu.vector_store %arg5[%58, %c0_30], %57 {strides = array<i32>} : memref<8x128xf32, #tpu.memory_space<vmem>>, vector<1x128xf32>,
    %c4_i32 = arith.constant 4 : i32
    %60 = arith.index_cast %c4_i32 : i32 to index
    %c0_31 = arith.constant 0 : index
    %61 = vector.load %arg6[%60, %c0_31] : memref<8x128xf32, #tpu.memory_space<vmem>>, vector<1x128xf32>
    %cst_32 = arith.constant dense<0.000000e+00> : vector<1x128xf32>
    %62 = tpu.matmul %57, %0, %cst_32 {dimension_numbers = #tpu.dot_dimension_numbers<[1], [0], [0], [1], [0, 0, 1, 1], [], []>} : vector<1x128xf32>, vector<128x128xf32>, vector<1x128xf32> -> vector<1x128xf32>
    %63 = arith.addf %61, %62 : vector<1x128xf32>
    %64 = math.tanh %63 : vector<1x128xf32>
    %cst_33 = arith.constant 5.000000e-01 : f32
    %65 = vector.broadcast %cst_33 : f32 to vector<1x128xf32>
    %66 = arith.mulf %65, %64 : vector<1x128xf32>
    %cst_34 = arith.constant 5.000000e-01 : f32
    %67 = vector.broadcast %cst_34 : f32 to vector<1x128xf32>
    %68 = arith.addf %66, %67 : vector<1x128xf32>
    %69 = arith.select %10, %64, %68 : vector<1x128xi1>, vector<1x128xf32>
    %70 = arith.index_cast %c4_i32 : i32 to index
    %c0_35 = arith.constant 0 : index
    %71 = vector.load %arg5[%70, %c0_35] : memref<8x128xf32, #tpu.memory_space<vmem>>, vector<1x128xf32>
    tpu.vector_store %arg5[%70, %c0_35], %69 {strides = array<i32>} : memref<8x128xf32, #tpu.memory_space<vmem>>, vector<1x128xf32>,
    %c5_i32 = arith.constant 5 : i32
    %72 = arith.index_cast %c5_i32 : i32 to index
    %c0_36 = arith.constant 0 : index
    %73 = vector.load %arg6[%72, %c0_36] : memref<8x128xf32, #tpu.memory_space<vmem>>, vector<1x128xf32>
    %cst_37 = arith.constant dense<0.000000e+00> : vector<1x128xf32>
    %74 = tpu.matmul %69, %0, %cst_37 {dimension_numbers = #tpu.dot_dimension_numbers<[1], [0], [0], [1], [0, 0, 1, 1], [], []>} : vector<1x128xf32>, vector<128x128xf32>, vector<1x128xf32> -> vector<1x128xf32>
    %75 = arith.addf %73, %74 : vector<1x128xf32>
    %76 = math.tanh %75 : vector<1x128xf32>
    %cst_38 = arith.constant 5.000000e-01 : f32
    %77 = vector.broadcast %cst_38 : f32 to vector<1x128xf32>
    %78 = arith.mulf %77, %76 : vector<1x128xf32>
    %cst_39 = arith.constant 5.000000e-01 : f32
    %79 = vector.broadcast %cst_39 : f32 to vector<1x128xf32>
    %80 = arith.addf %78, %79 : vector<1x128xf32>
    %81 = arith.select %10, %76, %80 : vector<1x128xi1>, vector<1x128xf32>
    %82 = arith.index_cast %c5_i32 : i32 to index
    %c0_40 = arith.constant 0 : index
    %83 = vector.load %arg5[%82, %c0_40] : memref<8x128xf32, #tpu.memory_space<vmem>>, vector<1x128xf32>
    tpu.vector_store %arg5[%82, %c0_40], %81 {strides = array<i32>} : memref<8x128xf32, #tpu.memory_space<vmem>>, vector<1x128xf32>,
    %c6_i32 = arith.constant 6 : i32
    %84 = arith.index_cast %c6_i32 : i32 to index
    %c0_41 = arith.constant 0 : index
    %85 = vector.load %arg6[%84, %c0_41] : memref<8x128xf32, #tpu.memory_space<vmem>>, vector<1x128xf32>
    %cst_42 = arith.constant dense<0.000000e+00> : vector<1x128xf32>
    %86 = tpu.matmul %81, %0, %cst_42 {dimension_numbers = #tpu.dot_dimension_numbers<[1], [0], [0], [1], [0, 0, 1, 1], [], []>} : vector<1x128xf32>, vector<128x128xf32>, vector<1x128xf32> -> vector<1x128xf32>
    %87 = arith.addf %85, %86 : vector<1x128xf32>
    %88 = math.tanh %87 : vector<1x128xf32>
    %cst_43 = arith.constant 5.000000e-01 : f32
    %89 = vector.broadcast %cst_43 : f32 to vector<1x128xf32>
    %90 = arith.mulf %89, %88 : vector<1x128xf32>
    %cst_44 = arith.constant 5.000000e-01 : f32
    %91 = vector.broadcast %cst_44 : f32 to vector<1x128xf32>
    %92 = arith.addf %90, %91 : vector<1x128xf32>
    %93 = arith.select %10, %88, %92 : vector<1x128xi1>, vector<1x128xf32>
    %94 = arith.index_cast %c6_i32 : i32 to index
    %c0_45 = arith.constant 0 : index
    %95 = vector.load %arg5[%94, %c0_45] : memref<8x128xf32, #tpu.memory_space<vmem>>, vector<1x128xf32>
    tpu.vector_store %arg5[%94, %c0_45], %93 {strides = array<i32>} : memref<8x128xf32, #tpu.memory_space<vmem>>, vector<1x128xf32>,
    %c7_i32 = arith.constant 7 : i32
    %96 = arith.index_cast %c7_i32 : i32 to index
    %c0_46 = arith.constant 0 : index
    %97 = vector.load %arg6[%96, %c0_46] : memref<8x128xf32, #tpu.memory_space<vmem>>, vector<1x128xf32>
    %cst_47 = arith.constant dense<0.000000e+00> : vector<1x128xf32>
    %98 = tpu.matmul %93, %0, %cst_47 {dimension_numbers = #tpu.dot_dimension_numbers<[1], [0], [0], [1], [0, 0, 1, 1], [], []>} : vector<1x128xf32>, vector<128x128xf32>, vector<1x128xf32> -> vector<1x128xf32>
    %99 = arith.addf %97, %98 : vector<1x128xf32>
    %100 = math.tanh %99 : vector<1x128xf32>
    %cst_48 = arith.constant 5.000000e-01 : f32
    %101 = vector.broadcast %cst_48 : f32 to vector<1x128xf32>
    %102 = arith.mulf %101, %100 : vector<1x128xf32>
    %cst_49 = arith.constant 5.000000e-01 : f32
    %103 = vector.broadcast %cst_49 : f32 to vector<1x128xf32>
    %104 = arith.addf %102, %103 : vector<1x128xf32>
    %105 = arith.select %10, %100, %104 : vector<1x128xi1>, vector<1x128xf32>
    %106 = arith.index_cast %c7_i32 : i32 to index
    %c0_50 = arith.constant 0 : index
    %107 = vector.load %arg5[%106, %c0_50] : memref<8x128xf32, #tpu.memory_space<vmem>>, vector<1x128xf32>
    tpu.vector_store %arg5[%106, %c0_50], %105 {strides = array<i32>} : memref<8x128xf32, #tpu.memory_space<vmem>>, vector<1x128xf32>,
    %c8_i32 = arith.constant 8 : i32
    return
  }
}

</mosaic_0001>

<llo_original>
// kernel: tpu_custom_call.1
$region0: #{tpu_custom_call.1}
  #allocation0 [shape = 'u32[]', space=smem, size = 0x4, offset = 0x4, fixed_abs, tag = 'smem constant byte address 0x4 - core index']
  #allocation1 [shape = 'u32[72,128]{1,0:T(1,128)}', space=vmem, size = 0x9000, scoped, tag = 'internal scratch']
  #allocation2 [shape = 'f32[8,128]{1,0:T(8,128)}', space=vmem, size = 0x1000, scoped, tag = 'scratch operand']
  %s0 = inlined_call_operand.hbm [shape: f32[8,16], index: 0, kind: input, shape index: {}]
  %s1 = inlined_call_operand.hbm [shape: f32[1,128], index: 1, kind: input, shape index: {}]
  %s2 = inlined_call_operand.hbm [shape: f32[16,128], index: 2, kind: input, shape index: {}]
  %s3 = inlined_call_operand.hbm [shape: f32[128,128], index: 3, kind: input, shape index: {}]
  %s4 = inlined_call_operand.vmem [shape: f32[1,128], index: 4, kind: input, shape index: {}]
  %s5 = inlined_call_operand.hbm [shape: f32[8,128], index: 5, kind: output, shape index: {}]
  %s6 = sld [smem:[#allocation0]]
  $region46: #{tpu_custom_call.1} parent=0
    _
  %s8 = ssub.s32 1, %s6
  %s9 = scalar_select 0, %s8, %s6
  $region1: #{tpu_custom_call.1} parent=0
    #allocation3 [shape = 'u8[4096]{0}', space=vmem, size = 0x1000, scoped, tag = 'input window, operand 0, single buffered']
    #allocation4 [shape = 's32[1]{0}', space=sflag, size = 0x4, scoped, tag = 'scoped memory for tpu_custom_call.1']
    #allocation5 [shape = 's32[1]{0}', space=sflag, size = 0x4, scoped, tag = 'scoped memory for tpu_custom_call.1']
    #allocation6 [shape = 'u8[512]{0}', space=vmem, size = 0x400, scoped, tag = 'input window, operand 1, single buffered']
    #allocation7 [shape = 's32[1]{0}', space=sflag, size = 0x4, scoped, tag = 'scoped memory for tpu_custom_call.1']
    #allocation8 [shape = 'u8[8192]{0}', space=vmem, size = 0x2000, scoped, tag = 'input window, operand 2, single buffered']
    #allocation9 [shape = 'u8[65536]{0}', space=vmem, size = 0x10000, scoped, tag = 'input window, operand 3, single buffered']
    #allocation10 [shape = 's32[1]{0}', space=sflag, size = 0x4, scoped, tag = 'scoped memory for tpu_custom_call.1']
    #allocation11 [shape = 'u8[4096]{0}', space=vmem, size = 0x1000, scoped, tag = 'output window, operand 0, single buffered']
    %10 = vsyncpa [#allocation4], 0
    %11 = vsyncpa [#allocation7], 0
    %12 = vsyncpa [#allocation10], 0
    %13 = vsyncpa [#allocation5], 0
    // Predicated region
    $region2: #{tpu_custom_call.1} parent=1 // pred_check
      _
    $region3: #{tpu_custom_call.1} parent=1 // pred_check_branch
      %15 = sbr.rel (0) target = $region5
    $region4: #{tpu_custom_call.1} parent=1 // pred_region
      %17 = vsyncadd [#allocation4], 0
      %s19 = sshll.u32 %s0, 4
      %s20 = int_to_ptr.hbm [resolvable:$true] %s19
      %s21 = sshll.u32 [#allocation3], 4
      %s22 = int_to_ptr.vmem [resolvable:$true] %s21
      %24 = dma.hbm_to_vmem [thread:$0]  %s20, 128, %s22, [#allocation4]
    $region5: #{tpu_custom_call.1} parent=1 // pred_fallthru
      _
    // Predicated region
    $region6: #{tpu_custom_call.1} parent=1 // pred_check
      _
    $region7: #{tpu_custom_call.1} parent=1 // pred_check_branch
      %26 = sbr.rel (0) target = $region9
    $region8: #{tpu_custom_call.1} parent=1 // pred_region
      %28 = vsyncadd [#allocation7], 0
      %s30 = sshll.u32 %s1, 4
      %s31 = int_to_ptr.hbm [resolvable:$true] %s30
      %s32 = sshll.u32 [#allocation6], 4
      %s33 = int_to_ptr.vmem [resolvable:$true] %s32
      %35 = dma.hbm_to_vmem [thread:$0]  %s31, 16, %s33, [#allocation7]
    $region9: #{tpu_custom_call.1} parent=1 // pred_fallthru
      _
    // Predicated region
    $region10: #{tpu_custom_call.1} parent=1 // pred_check
      _
    $region11: #{tpu_custom_call.1} parent=1 // pred_check_branch
      %37 = sbr.rel (0) target = $region13
    $region12: #{tpu_custom_call.1} parent=1 // pred_region
      %39 = vsyncadd [#allocation7], 0
      %s40 = sshll.u32 %s2, 4
      %s41 = int_to_ptr.hbm [resolvable:$true] %s40
      %s42 = sshll.u32 [#allocation8], 4
      %s43 = int_to_ptr.vmem [resolvable:$true] %s42
      %48 = dma.hbm_to_vmem [thread:$0]  %s41, 256, %s43, [#allocation7], 128, 128, 8
    $region13: #{tpu_custom_call.1} parent=1 // pred_fallthru
      _
    // Predicated region
    $region14: #{tpu_custom_call.1} parent=1 // pred_check
      _
    $region15: #{tpu_custom_call.1} parent=1 // pred_check_branch
      %50 = sbr.rel (0) target = $region17
    $region16: #{tpu_custom_call.1} parent=1 // pred_region
      %52 = vsyncadd [#allocation10], 0
      %s53 = sshll.u32 %s3, 4
      %s54 = int_to_ptr.hbm [resolvable:$true] %s53
      %s55 = sshll.u32 [#allocation9], 4
      %s56 = int_to_ptr.vmem [resolvable:$true] %s55
      %61 = dma.hbm_to_vmem [thread:$0]  %s54, 2048, %s56, [#allocation10], 128, 128, 8
    $region17: #{tpu_custom_call.1} parent=1 // pred_fallthru
      _
    // Predicated region
    $region18: #{tpu_custom_call.1} parent=1 // pred_check
      _
    $region19: #{tpu_custom_call.1} parent=1 // pred_check_branch
      %63 = sbr.rel (0) target = $region21
    $region20: #{tpu_custom_call.1} parent=1 // pred_region
      _
    $region21: #{tpu_custom_call.1} parent=1 // pred_fallthru
      _
    // Predicated region
    $region22: #{tpu_custom_call.1} parent=1 // pred_check
      _
    $region23: #{tpu_custom_call.1} parent=1 // pred_check_branch
      %65 = sbr.rel (0) target = $region25
    $region24: #{tpu_custom_call.1} parent=1 // pred_region
      %67 = dma.done [#allocation4], 128
    $region25: #{tpu_custom_call.1} parent=1 // pred_fallthru
      _
    // Predicated region
    $region26: #{tpu_custom_call.1} parent=1 // pred_check
      _
    $region27: #{tpu_custom_call.1} parent=1 // pred_check_branch
      %69 = sbr.rel (0) target = $region29
    $region28: #{tpu_custom_call.1} parent=1 // pred_region
      %71 = dma.done [#allocation7], 16
    $region29: #{tpu_custom_call.1} parent=1 // pred_fallthru
      _
    // Predicated region
    $region30: #{tpu_custom_call.1} parent=1 // pred_check
      _
    $region31: #{tpu_custom_call.1} parent=1 // pred_check_branch
      %73 = sbr.rel (0) target = $region33
    $region32: #{tpu_custom_call.1} parent=1 // pred_region
      %75 = dma.done [#allocation7], 256
    $region33: #{tpu_custom_call.1} parent=1 // pred_fallthru
      _
    // Predicated region
    $region34: #{tpu_custom_call.1} parent=1 // pred_check
      _
    $region35: #{tpu_custom_call.1} parent=1 // pred_check_branch
      %77 = sbr.rel (0) target = $region37
    $region36: #{tpu_custom_call.1} parent=1 // pred_region
      %79 = dma.done [#allocation10], 2048
    $region37: #{tpu_custom_call.1} parent=1 // pred_fallthru
      _
    %v80 = vld [vmem:[#allocation9] sm:$0xff]
    %v81 = vld [vmem:[#allocation9 + $0x8] sm:$0xff]
    %v82 = vld [vmem:[#allocation9 + $0x10] sm:$0xff]
    %v83 = vld [vmem:[#allocation9 + $0x18] sm:$0xff]
    %v84 = vld [vmem:[#allocation9 + $0x20] sm:$0xff]
    %v85 = vld [vmem:[#allocation9 + $0x28] sm:$0xff]
    %v86 = vld [vmem:[#allocation9 + $0x30] sm:$0xff]
    %v87 = vld [vmem:[#allocation9 + $0x38] sm:$0xff]
    %v88 = vld [vmem:[#allocation9 + $0x40] sm:$0xff]
    %v89 = vld [vmem:[#allocation9 + $0x48] sm:$0xff]
    %v90 = vld [vmem:[#allocation9 + $0x50] sm:$0xff]
    %v91 = vld [vmem:[#allocation9 + $0x58] sm:$0xff]
    %v92 = vld [vmem:[#allocation9 + $0x60] sm:$0xff]
    %v93 = vld [vmem:[#allocation9 + $0x68] sm:$0xff]
    %v94 = vld [vmem:[#allocation9 + $0x70] sm:$0xff]
    %v95 = vld [vmem:[#allocation9 + $0x78] sm:$0xff]
    %v96 = vld [vmem:[#allocation3] sm:$0xff]
    %v97 = vld [vmem:[#allocation8] sm:$0xff]
    %v98 = vld [vmem:[#allocation8 + $0x8] sm:$0xff]
    %v99 = vld [vmem:[%s4] sm:$0x1]
    %v101 = vperm.slane %v99, 0
    %vm103 = vcmask 130048
    %v105 = vsel %vm103, %v96, 0
    %107 = vmatpush.msra.mxu0 0.0
    %108 = vmatpush.msra.mxu0 0.0
    %109 = vmatpush.msra.mxu0 0.0
    %110 = vmatpush.msra.mxu0 0.0
    %111 = vmatpush.msra.mxu0 0.0
    %112 = vmatpush.msra.mxu0 0.0
    %113 = vmatpush.msra.mxu0 0.0
    %114 = vmatpush.msra.mxu0 0.0
    %115 = vmatpush.msra.mxu0 0.0
    %116 = vmatpush.msra.mxu0 0.0
    %117 = vmatpush.msra.mxu0 0.0
    %118 = vmatpush.msra.mxu0 0.0
    %119 = vmatpush.msra.mxu0 0.0
    %120 = vmatpush.msra.mxu0 0.0
    %121 = vmatpush.msra.mxu0 %v98
    %122 = vmatpush.msra.mxu0 %v97
    %123 = vmatmul.f32.gmra.mxu0 %v105
    %v124 = vpop.f32.mrf.mxu0
    %v125 = vadd.f32 %v101, %v124
    %126 = vdwg.mxu0
    %127 = vst [vmem:[#allocation2] sm:$0xff] %v125
    %v128 = vlaneseq
    %v129 = vand.u32 %v128, 127
    %vm130 = vcmp.lt.s32.totalorder %v129, 32
    %v131 = vld [vmem:[#allocation6] sm:$0x1]
    %v132 = vld [vmem:[#allocation2] sm:$0x1]
    %133 = vmatpush.msra.mxu0 %v95
    %134 = vmatpush.msra.mxu0 %v94
    %135 = vmatpush.msra.mxu0 %v93
    %136 = vmatpush.msra.mxu0 %v92
    %137 = vmatpush.msra.mxu0 %v91
    %138 = vmatpush.msra.mxu0 %v90
    %139 = vmatpush.msra.mxu0 %v89
    %140 = vmatpush.msra.mxu0 %v88
    %141 = vmatpush.msra.mxu0 %v87
    %142 = vmatpush.msra.mxu0 %v86
    %143 = vmatpush.msra.mxu0 %v85
    %144 = vmatpush.msra.mxu0 %v84
    %145 = vmatpush.msra.mxu0 %v83
    %146 = vmatpush.msra.mxu0 %v82
    %147 = vmatpush.msra.mxu0 %v81
    %148 = vmatpush.msra.mxu0 %v80
    %149 = vmatmul.f32.gmra.mxu0 %v131
    %v150 = vpop.f32.mrf.mxu0
    %v151 = vadd.f32 0.0, %v150
    %152 = vdwg.mxu0
    %v153 = vadd.f32 %v132, %v151
    %v154 = vtanh.pop %v153
    %v155 = vmul.f32 %v154, 0.5
    %v156 = vadd.f32 %v155, 0.5
    %v157 = vsel %vm130, %v154, %v156
    %158 = vst [vmem:[#allocation11] sm:$0x1] %v157
    %v159 = vld [vmem:[#allocation2 + $0x1] sm:$0x1]
    %160 = vmatpush.msra.mxu0 %v95
    %161 = vmatpush.msra.mxu0 %v94
    %162 = vmatpush.msra.mxu0 %v93
    %163 = vmatpush.msra.mxu0 %v92
    %164 = vmatpush.msra.mxu0 %v91
    %165 = vmatpush.msra.mxu0 %v90
    %166 = vmatpush.msra.mxu0 %v89
    %167 = vmatpush.msra.mxu0 %v88
    %168 = vmatpush.msra.mxu0 %v87
    %169 = vmatpush.msra.mxu0 %v86
    %170 = vmatpush.msra.mxu0 %v85
    %171 = vmatpush.msra.mxu0 %v84
    %172 = vmatpush.msra.mxu0 %v83
    %173 = vmatpush.msra.mxu0 %v82
    %174 = vmatpush.msra.mxu0 %v81
    %175 = vmatpush.msra.mxu0 %v80
    %176 = vmatmul.f32.gmra.mxu0 %v157
    %v177 = vpop.f32.mrf.mxu0
    %v178 = vadd.f32 0.0, %v177
    %179 = vdwg.mxu0
    %v180 = vadd.f32 %v159, %v178
    %v181 = vtanh.pop %v180
    %v182 = vmul.f32 %v181, 0.5
    %v183 = vadd.f32 %v182, 0.5
    %v184 = vsel %vm130, %v181, %v183
    %185 = vst [vmem:[#allocation11 + $0x1] sm:$0x1] %v184
    %v186 = vld [vmem:[#allocation2 + $0x2] sm:$0x1]
    %187 = vmatpush.msra.mxu0 %v95
    %188 = vmatpush.msra.mxu0 %v94
    %189 = vmatpush.msra.mxu0 %v93
    %190 = vmatpush.msra.mxu0 %v92
    %191 = vmatpush.msra.mxu0 %v91
    %192 = vmatpush.msra.mxu0 %v90
    %193 = vmatpush.msra.mxu0 %v89
    %194 = vmatpush.msra.mxu0 %v88
    %195 = vmatpush.msra.mxu0 %v87
    %196 = vmatpush.msra.mxu0 %v86
    %197 = vmatpush.msra.mxu0 %v85
    %198 = vmatpush.msra.mxu0 %v84
    %199 = vmatpush.msra.mxu0 %v83
    %200 = vmatpush.msra.mxu0 %v82
    %201 = vmatpush.msra.mxu0 %v81
    %202 = vmatpush.msra.mxu0 %v80
    %203 = vmatmul.f32.gmra.mxu0 %v184
    %v204 = vpop.f32.mrf.mxu0
    %v205 = vadd.f32 0.0, %v204
    %206 = vdwg.mxu0
    %v207 = vadd.f32 %v186, %v205
    %v208 = vtanh.pop %v207
    %v209 = vmul.f32 %v208, 0.5
    %v210 = vadd.f32 %v209, 0.5
    %v211 = vsel %vm130, %v208, %v210
    %212 = vst [vmem:[#allocation11 + $0x2] sm:$0x1] %v211
    %v213 = vld [vmem:[#allocation2 + $0x3] sm:$0x1]
    %214 = vmatpush.msra.mxu0 %v95
    %215 = vmatpush.msra.mxu0 %v94
    %216 = vmatpush.msra.mxu0 %v93
    %217 = vmatpush.msra.mxu0 %v92
    %218 = vmatpush.msra.mxu0 %v91
    %219 = vmatpush.msra.mxu0 %v90
    %220 = vmatpush.msra.mxu0 %v89
    %221 = vmatpush.msra.mxu0 %v88
    %222 = vmatpush.msra.mxu0 %v87
    %223 = vmatpush.msra.mxu0 %v86
    %224 = vmatpush.msra.mxu0 %v85
    %225 = vmatpush.msra.mxu0 %v84
    %226 = vmatpush.msra.mxu0 %v83
    %227 = vmatpush.msra.mxu0 %v82
    %228 = vmatpush.msra.mxu0 %v81
    %229 = vmatpush.msra.mxu0 %v80
    %230 = vmatmul.f32.gmra.mxu0 %v211
    %v231 = vpop.f32.mrf.mxu0
    %v232 = vadd.f32 0.0, %v231
    %233 = vdwg.mxu0
    %v234 = vadd.f32 %v213, %v232
    %v235 = vtanh.pop %v234
    %v236 = vmul.f32 %v235, 0.5
    %v237 = vadd.f32 %v236, 0.5
    %v238 = vsel %vm130, %v235, %v237
    %239 = vst [vmem:[#allocation11 + $0x3] sm:$0x1] %v238
    %v240 = vld [vmem:[#allocation2 + $0x4] sm:$0x1]
    %241 = vmatpush.msra.mxu0 %v95
    %242 = vmatpush.msra.mxu0 %v94
    %243 = vmatpush.msra.mxu0 %v93
    %244 = vmatpush.msra.mxu0 %v92
    %245 = vmatpush.msra.mxu0 %v91
    %246 = vmatpush.msra.mxu0 %v90
    %247 = vmatpush.msra.mxu0 %v89
    %248 = vmatpush.msra.mxu0 %v88
    %249 = vmatpush.msra.mxu0 %v87
    %250 = vmatpush.msra.mxu0 %v86
    %251 = vmatpush.msra.mxu0 %v85
    %252 = vmatpush.msra.mxu0 %v84
    %253 = vmatpush.msra.mxu0 %v83
    %254 = vmatpush.msra.mxu0 %v82
    %255 = vmatpush.msra.mxu0 %v81
    %256 = vmatpush.msra.mxu0 %v80
    %257 = vmatmul.f32.gmra.mxu0 %v238
    %v258 = vpop.f32.mrf.mxu0
    %v259 = vadd.f32 0.0, %v258
    %260 = vdwg.mxu0
    %v261 = vadd.f32 %v240, %v259
    %v262 = vtanh.pop %v261
    %v263 = vmul.f32 %v262, 0.5
    %v264 = vadd.f32 %v263, 0.5
    %v265 = vsel %vm130, %v262, %v264
    %266 = vst [vmem:[#allocation11 + $0x4] sm:$0x1] %v265
    %v267 = vld [vmem:[#allocation2 + $0x5] sm:$0x1]
    %268 = vmatpush.msra.mxu0 %v95
    %269 = vmatpush.msra.mxu0 %v94
    %270 = vmatpush.msra.mxu0 %v93
    %271 = vmatpush.msra.mxu0 %v92
    %272 = vmatpush.msra.mxu0 %v91
    %273 = vmatpush.msra.mxu0 %v90
    %274 = vmatpush.msra.mxu0 %v89
    %275 = vmatpush.msra.mxu0 %v88
    %276 = vmatpush.msra.mxu0 %v87
    %277 = vmatpush.msra.mxu0 %v86
    %278 = vmatpush.msra.mxu0 %v85
    %279 = vmatpush.msra.mxu0 %v84
    %280 = vmatpush.msra.mxu0 %v83
    %281 = vmatpush.msra.mxu0 %v82
    %282 = vmatpush.msra.mxu0 %v81
    %283 = vmatpush.msra.mxu0 %v80
    %284 = vmatmul.f32.gmra.mxu0 %v265
    %v285 = vpop.f32.mrf.mxu0
    %v286 = vadd.f32 0.0, %v285
    %287 = vdwg.mxu0
    %v288 = vadd.f32 %v267, %v286
    %v289 = vtanh.pop %v288
    %v290 = vmul.f32 %v289, 0.5
    %v291 = vadd.f32 %v290, 0.5
    %v292 = vsel %vm130, %v289, %v291
    %293 = vst [vmem:[#allocation11 + $0x5] sm:$0x1] %v292
    %v294 = vld [vmem:[#allocation2 + $0x6] sm:$0x1]
    %295 = vmatpush.msra.mxu0 %v95
    %296 = vmatpush.msra.mxu0 %v94
    %297 = vmatpush.msra.mxu0 %v93
    %298 = vmatpush.msra.mxu0 %v92
    %299 = vmatpush.msra.mxu0 %v91
    %300 = vmatpush.msra.mxu0 %v90
    %301 = vmatpush.msra.mxu0 %v89
    %302 = vmatpush.msra.mxu0 %v88
    %303 = vmatpush.msra.mxu0 %v87
    %304 = vmatpush.msra.mxu0 %v86
    %305 = vmatpush.msra.mxu0 %v85
    %306 = vmatpush.msra.mxu0 %v84
    %307 = vmatpush.msra.mxu0 %v83
    %308 = vmatpush.msra.mxu0 %v82
    %309 = vmatpush.msra.mxu0 %v81
    %310 = vmatpush.msra.mxu0 %v80
    %311 = vmatmul.f32.gmra.mxu0 %v292
    %v312 = vpop.f32.mrf.mxu0
    %v313 = vadd.f32 0.0, %v312
    %314 = vdwg.mxu0
    %v315 = vadd.f32 %v294, %v313
    %v316 = vtanh.pop %v315
    %v317 = vmul.f32 %v316, 0.5
    %v318 = vadd.f32 %v317, 0.5
    %v319 = vsel %vm130, %v316, %v318
    %320 = vst [vmem:[#allocation11 + $0x6] sm:$0x1] %v319
    %v321 = vld [vmem:[#allocation2 + $0x7] sm:$0x1]
    %322 = vmatpush.msra.mxu0 %v95
    %323 = vmatpush.msra.mxu0 %v94
    %324 = vmatpush.msra.mxu0 %v93
    %325 = vmatpush.msra.mxu0 %v92
    %326 = vmatpush.msra.mxu0 %v91
    %327 = vmatpush.msra.mxu0 %v90
    %328 = vmatpush.msra.mxu0 %v89
    %329 = vmatpush.msra.mxu0 %v88
    %330 = vmatpush.msra.mxu0 %v87
    %331 = vmatpush.msra.mxu0 %v86
    %332 = vmatpush.msra.mxu0 %v85
    %333 = vmatpush.msra.mxu0 %v84
    %334 = vmatpush.msra.mxu0 %v83
    %335 = vmatpush.msra.mxu0 %v82
    %336 = vmatpush.msra.mxu0 %v81
    %337 = vmatpush.msra.mxu0 %v80
    %338 = vmatmul.f32.gmra.mxu0 %v319
    %v339 = vpop.f32.mrf.mxu0
    %v340 = vadd.f32 0.0, %v339
    %341 = vdwg.mxu0
    %v342 = vadd.f32 %v321, %v340
    %v343 = vtanh.pop %v342
    %v344 = vmul.f32 %v343, 0.5
    %v345 = vadd.f32 %v344, 0.5
    %v346 = vsel %vm130, %v343, %v345
    %347 = vst [vmem:[#allocation11 + $0x7] sm:$0x1] %v346
    // Predicated region
    $region38: #{tpu_custom_call.1} parent=1 // pred_check
      _
    $region39: #{tpu_custom_call.1} parent=1 // pred_check_branch
      %349 = sbr.rel (0) target = $region41
    $region40: #{tpu_custom_call.1} parent=1 // pred_region
      %351 = vsyncadd [#allocation5], 0
      %s353 = sshll.u32 [#allocation11], 4
      %s354 = int_to_ptr.vmem [resolvable:$true] %s353
      %s355 = sshll.u32 %s5, 4
      %s356 = int_to_ptr.hbm [resolvable:$true] %s355
      %358 = dma.vmem_to_hbm [thread:$0]  %s354, 128, %s356, [#allocation5]
    $region41: #{tpu_custom_call.1} parent=1 // pred_fallthru
      _
    // Predicated region
    $region42: #{tpu_custom_call.1} parent=1 // pred_check
      _
    $region43: #{tpu_custom_call.1} parent=1 // pred_check_branch
      %360 = sbr.rel (0) target = $region45
    $region44: #{tpu_custom_call.1} parent=1 // pred_region
      %362 = dma.done [#allocation5], 128
    $region45: #{tpu_custom_call.1} parent=1 // pred_fallthru
      _
    %363 = vsyncpa [#allocation4], 1
    %364 = vsyncpa [#allocation7], 1
    %365 = vsyncpa [#allocation10], 1
    %366 = vsyncpa [#allocation5], 1

</llo_original>
